<compile_context>
chip_gen: v7x
topology: tpu7x:2x2x1
jax: 0.10.0
libtpu: 0.0.40
codegen_flags: <defaults>
</compile_context>

<pallas_src>
import jax
import jax.numpy as jnp
from jax.experimental import pallas as pl
from jax.experimental.pallas import tpu as pltpu


def _bias_encoding_kernel(x_ref, sbias_ref, fbias_ref, o_ref):
    # x_ref:     (Bt, Fp) input tile (Fp = padded L*E, lane-dense)
    # sbias_ref: (Bt, 1)  per-row (gathered) session bias, f32
    # fbias_ref: (1, Fp)  fused position+item bias, f32
    # o_ref:     (Bt, Fp) output tile (same dtype as x)
    out = x_ref[...].astype(jnp.float32) + sbias_ref[...] + fbias_ref[...]
    o_ref[...] = out.astype(o_ref.dtype)


def _vmem_budget_bytes(frac=0.7, fallback=64 * 1024 * 1024):
    """~70% of this chip's physical VMEM; conservative fallback = v7x (64 MiB/TC)."""
    try:
        cap = int(pltpu.get_tpu_info().vmem_capacity_bytes)
    except Exception:
        cap = fallback
    return int(cap * frac)


def _choose_batch_tile(B, F_pad, x_itemsize, out_itemsize, vmem_budget_bytes,
                       max_x_tile_bytes=8 * 1024 * 1024, min_grid_steps=4):
    """Largest batch tile whose *pipelined* VMEM footprint fits the budget.

    Footprint per grid step:
      - x tile + out tile, each double-buffered,
      - the (bt, 1) session-bias tile, lane-padded to (bt, 128) f32, x2 buffers,
      - fixed: the fused (1, F_pad) bias tile, sublane-padded to 8, x2 buffers.
    The x tile is additionally capped at `max_x_tile_bytes` (per-step overhead
    is already small there; bigger tiles mostly grow compile time), and we keep
    >= `min_grid_steps` grid steps when B allows so the batch axis can be split
    across TensorCores (v7x) and the pipeline has steps to overlap.
    """
    if B <= 8:
        return B                                   # single full block
    per_row = 2 * F_pad * (x_itemsize + out_itemsize) + 2 * 128 * 4
    fixed = 2 * 8 * F_pad * 4
    bt_vmem = max(8, (vmem_budget_bytes - fixed) // per_row)
    bt_size = max(8, max_x_tile_bytes // (F_pad * x_itemsize))
    bt_cap = max(8, (min(bt_vmem, bt_size) // 8) * 8)
    steps = max(min_grid_steps, pl.cdiv(B, bt_cap))
    bt = min(bt_cap, ((pl.cdiv(B, steps) + 7) // 8) * 8)
    return int(min(max(bt, 8), B))


def bias_encoding(x, session_index, session_bias, position_bias, item_bias,
                  *, donate_x=False):
    """Pallas implementation of BiasEncodingLayer.forward.

    Args:
        x:             (B, L, E) float session embeddings.
        session_index: (B,)      int   session index per batch element.
        session_bias:  (S, 1, 1) float (max_num_session)
        position_bias: (1, L, 1) float (max_num_position == L)
        item_bias:     (1, 1, E) float
        donate_x:      alias x's buffer to the output (caller must donate x).
    Returns:
        (B, L, E), dtype of x: x + session_bias[idx] + position_bias + item_bias
    """
    B, L, E = x.shape
    S = session_bias.shape[0]
    F = L * E

    # Hoist the O(B) gather and the O(L*E) bias fold into XLA.
    idx = session_index.astype(jnp.int32)
    sbias = session_bias.reshape(S).astype(jnp.float32)[idx].reshape(B, 1)   # (B, 1)
    fbias = (position_bias.reshape(L, 1).astype(jnp.float32)
             + item_bias.reshape(1, E).astype(jnp.float32)).reshape(1, F)    # (1, F)

    x2d = x.reshape(B, F)

    # Lane-dense F: pad to a multiple of 128 so every output store is an
    # unmasked vst (biggest measured store-path lever). Costs one pad copy of x
    # plus an output slice; only taken when F % 128 != 0 (demo F=256: no-op).
    F_pad = ((F + 127) // 128) * 128
    if F_pad != F:
        x2d = jnp.pad(x2d, ((0, 0), (0, F_pad - F)))
        fbias = jnp.pad(fbias, ((0, 0), (0, F_pad - F)))
        donate_x = False  # shapes no longer match; aliasing not possible

    x_itemsize = jnp.dtype(x.dtype).itemsize
    vmem_budget = _vmem_budget_bytes()
    bt = _choose_batch_tile(B, F_pad, x_itemsize, x_itemsize, vmem_budget)
    grid = (pl.cdiv(B, bt),)

    out2d = pl.pallas_call(
        _bias_encoding_kernel,
        out_shape=jax.ShapeDtypeStruct((B, F_pad), x.dtype),
        grid_spec=pltpu.PrefetchScalarGridSpec(
            num_scalar_prefetch=0,
            grid=grid,
            in_specs=[
                pl.BlockSpec((bt, F_pad), lambda i: (i, 0)),   # x tile
                pl.BlockSpec((bt, 1), lambda i: (i, 0)),       # per-row session bias
                pl.BlockSpec((1, F_pad), lambda i: (0, 0)),    # fused pos+item bias
            ],
            out_specs=pl.BlockSpec((bt, F_pad), lambda i: (i, 0)),
        ),
        compiler_params=pltpu.CompilerParams(
            # "parallel" lets the batch-tile axis be sharded across TensorCores
            # on multi-core chips (v7x); it is purely a reduction-free stream.
            dimension_semantics=("parallel",),
            vmem_limit_bytes=int(vmem_budget),
        ),
        input_output_aliases=({0: 0} if donate_x else {}),
    )(x2d, sbias, fbias)

    if F_pad != F:
        out2d = out2d[:, :F]
    return out2d.reshape(B, L, E)


def _reference(x, session_index, session_bias, position_bias, item_bias):
    B = x.shape[0]
    return (x
            + session_bias[session_index].reshape(B, 1, 1)
            + position_bias
            + item_bias)


if __name__ == "__main__":
    L = 8                 # max_num_position (sequence length of a session)
    E = 32                # embed_size
    S = 4                 # max_num_session

    key = jax.random.PRNGKey(0)
    k_x, k_idx, k_sb, k_pb, k_ib = jax.random.split(key, 5)

    # Deterministic parameter init mirroring nn.init.normal_ on the same shapes.
    session_bias = jax.random.normal(k_sb, (S, 1, 1), dtype=jnp.float32)
    position_bias = jax.random.normal(k_pb, (1, L, 1), dtype=jnp.float32)
    item_bias = jax.random.normal(k_ib, (1, 1, E), dtype=jnp.float32)

    # Check 1: tiny batch (single full block, B < 8 path).
    B = 2
    x = jax.random.normal(k_x, (B, L, E), dtype=jnp.float32)
    session_index = jax.random.randint(k_idx, (B,), 0, S, dtype=jnp.int32)
    out = jax.block_until_ready(
        bias_encoding(x, session_index, session_bias, position_bias, item_bias))
    ref = _reference(x, session_index, session_bias, position_bias, item_bias)
    assert out.shape == (B, L, E) and out.dtype == x.dtype
    assert jnp.allclose(out, ref, atol=1e-5), "mismatch vs reference (B=2)"

    # Check 2: multi-step grid with a partial (masked) last batch tile.
    B2 = 10
    x2 = jax.random.normal(k_x, (B2, L, E), dtype=jnp.float32)
    idx2 = jax.random.randint(k_idx, (B2,), 0, S, dtype=jnp.int32)
    out2 = jax.block_until_ready(
        bias_encoding(x2, idx2, session_bias, position_bias, item_bias))
    ref2 = _reference(x2, idx2, session_bias, position_bias, item_bias)
    assert out2.shape == (B2, L, E)
    assert jnp.allclose(out2, ref2, atol=1e-5), "mismatch vs reference (B=10)"

    print("KERNEL_OK")
</pallas_src>

<mosaic_0001>
module attributes {stable_mosaic.version = 11 : i64} {
  func.func @_bias_encoding_kernel(%arg0: i32, %arg1: memref<2x256xf32, #tpu.memory_space<vmem>>, %arg2: memref<2x1xf32, #tpu.memory_space<vmem>>, %arg3: memref<1x256xf32, #tpu.memory_space<vmem>>, %arg4: memref<2x256xf32, #tpu.memory_space<vmem>>) attributes {dimension_semantics = [#tpu.dimension_semantics<parallel>], iteration_bounds = array<i64: 1>, scalar_prefetch = 0 : i64, scratch_operands = 0 : i64, tpu.core_type = #tpu.core_type<tc>, window_params = [{transform_indices = @transform_0, window_bounds = array<i64: 2, 256>}, {transform_indices = @transform_1, window_bounds = array<i64: 2, 1>}, {pipeline_mode = #tpu.pipeline_mode<synchronous>, transform_indices = @transform_2, window_bounds = array<i64: 1, 256>}, {transform_indices = @transform_3, window_bounds = array<i64: 2, 256>}]} {
    %c0 = arith.constant 0 : index
    %c0_0 = arith.constant 0 : index
    %0 = vector.load %arg1[%c0, %c0_0] : memref<2x256xf32, #tpu.memory_space<vmem>>, vector<2x256xf32>
    %c0_1 = arith.constant 0 : index
    %c0_2 = arith.constant 0 : index
    %1 = vector.load %arg2[%c0_1, %c0_2] : memref<2x1xf32, #tpu.memory_space<vmem>>, vector<2x1xf32>
    %2 = vector.broadcast %1 : vector<2x1xf32> to vector<2x256xf32>
    %3 = arith.addf %0, %2 : vector<2x256xf32>
    %c0_3 = arith.constant 0 : index
    %c0_4 = arith.constant 0 : index
    %4 = vector.load %arg3[%c0_3, %c0_4] : memref<1x256xf32, #tpu.memory_space<vmem>>, vector<1x256xf32>
    %5 = vector.broadcast %4 : vector<1x256xf32> to vector<2x256xf32>
    %6 = arith.addf %3, %5 : vector<2x256xf32>
    %c0_5 = arith.constant 0 : index
    %c0_6 = arith.constant 0 : index
    %7 = vector.load %arg4[%c0_5, %c0_6] : memref<2x256xf32, #tpu.memory_space<vmem>>, vector<2x256xf32>
    tpu.vector_store %arg4[%c0_5, %c0_6], %6 {strides = array<i32>} : memref<2x256xf32, #tpu.memory_space<vmem>>, vector<2x256xf32>,
    return
  }
  func.func @transform_0(%arg0: i32) -> (i32, i32) {
    %c0_i32 = arith.constant 0 : i32
    %c0_i32_0 = arith.constant 0 : i32
    return %arg0, %c0_i32 : i32, i32
  }
  func.func @transform_1(%arg0: i32) -> (i32, i32) {
    %c0_i32 = arith.constant 0 : i32
    %c0_i32_0 = arith.constant 0 : i32
    return %arg0, %c0_i32 : i32, i32
  }
  func.func @transform_2(%arg0: i32) -> (i32, i32) {
    %c0_i32 = arith.constant 0 : i32
    %c0_i32_0 = arith.constant 0 : i32
    %c0_i32_1 = arith.constant 0 : i32
    return %c0_i32, %c0_i32_0 : i32, i32
  }
  func.func @transform_3(%arg0: i32) -> (i32, i32) {
    %c0_i32 = arith.constant 0 : i32
    %c0_i32_0 = arith.constant 0 : i32
    return %arg0, %c0_i32 : i32, i32
  }
}

</mosaic_0001>

<llo_original>
// kernel: tpu_custom_call.1
$region0: #{tpu_custom_call.1}
  #allocation0 [shape = 'u32[]', space=smem, size = 0x4, offset = 0x4, fixed_abs, tag = 'smem constant byte address 0x4 - core index']
  #allocation1 [shape = 'u32[144,128]{1,0:T(1,128)}', space=vmem, size = 0x12000, scoped, tag = 'internal scratch']
  %s0 = inlined_call_operand.hbm [shape: f32[2,256], index: 0, kind: input, shape index: {}]
  %s1 = inlined_call_operand.vmem [shape: f32[2,1], index: 1, kind: input, shape index: {}]
  %s2 = inlined_call_operand.vmem [shape: f32[1,256], index: 2, kind: input, shape index: {}]
  %s3 = inlined_call_operand.hbm [shape: f32[2,256], index: 3, kind: output, shape index: {}]
  %s4 = sld [smem:[#allocation0]]
  $region26: #{tpu_custom_call.1} parent=0
    _
  %s6 = ssub.s32 1, %s4
  %s7 = scalar_select 0, %s6, %s4
  $region1: #{tpu_custom_call.1} parent=0
    #allocation2 [shape = 'u8[2048]{0}', space=vmem, size = 0x800, scoped, tag = 'input window, operand 0, single buffered']
    #allocation3 [shape = 's32[1]{0}', space=sflag, size = 0x4, scoped, tag = 'scoped memory for tpu_custom_call.1']
    #allocation4 [shape = 's32[1]{0}', space=sflag, size = 0x4, scoped, tag = 'scoped memory for tpu_custom_call.1']
    #allocation5 [shape = 'u8[2048]{0}', space=vmem, size = 0x800, scoped, tag = 'output window, operand 0, single buffered']
    %8 = vsyncpa [#allocation3], 0
    %9 = vsyncpa [#allocation4], 0
    // Predicated region
    $region2: #{tpu_custom_call.1} parent=1 // pred_check
      _
    $region3: #{tpu_custom_call.1} parent=1 // pred_check_branch
      %11 = sbr.rel (0) target = $region5
    $region4: #{tpu_custom_call.1} parent=1 // pred_region
      %s13 = ssub.s32 64, 64
      %14 = vsyncadd [#allocation3], %s13
      %s16 = sshll.u32 [#allocation2], 4
      %s17 = int_to_ptr.vmem [resolvable:$true] %s16
      %19 = dma.hbm_to_vmem [thread:$0]  %s0, 64, %s17, [#allocation3]
    $region5: #{tpu_custom_call.1} parent=1 // pred_fallthru
      _
    // Predicated region
    $region6: #{tpu_custom_call.1} parent=1 // pred_check
      _
    $region7: #{tpu_custom_call.1} parent=1 // pred_check_branch
      %21 = sbr.rel (0) target = $region9
    $region8: #{tpu_custom_call.1} parent=1 // pred_region
      _
    $region9: #{tpu_custom_call.1} parent=1 // pred_fallthru
      _
    // Predicated region
    $region10: #{tpu_custom_call.1} parent=1 // pred_check
      _
    $region11: #{tpu_custom_call.1} parent=1 // pred_check_branch
      %23 = sbr.rel (0) target = $region13
    $region12: #{tpu_custom_call.1} parent=1 // pred_region
      _
    $region13: #{tpu_custom_call.1} parent=1 // pred_fallthru
      _
    // Predicated region
    $region14: #{tpu_custom_call.1} parent=1 // pred_check
      _
    $region15: #{tpu_custom_call.1} parent=1 // pred_check_branch
      %25 = sbr.rel (0) target = $region17
    $region16: #{tpu_custom_call.1} parent=1 // pred_region
      %26 = dma.done [#allocation3], 64
    $region17: #{tpu_custom_call.1} parent=1 // pred_fallthru
      _
    %v27 = vld [vmem:[#allocation2] sm:$0xf]
    %v28 = vld [vmem:[%s1] sm:$0x3]
    %30 = vset.pattern.permute.xlu0 0
    %31 = vperm.xlu0 %30, %v28
    %v32 = vpop.permute.xlu0 %31
    %v34 = vunpack.c.l.s4 269488144
    %v35 = vunpack.c.0.s8 %v34
    %v36 = vlaneseq
    %v37 = vshrl.u32 %v36, 7
    %v38 = vsub.s32 %v35, %v37
    %v39 = vrot.slane %v32, %v38
    %v41 = vadd.f32 %v27, %v39
    %v42 = vld [vmem:[%s2] sm:$0x3]
    %v44 = vlaneseq
    %v45 = vshrl.u32 %v44, 7
    %v46 = vsub.s32 0, %v45
    %v47 = vrot.slane %v42, %v46
    %v48 = vlaneseq
    %v49 = vshrl.u32 %v48, 7
    %v50 = vsub.s32 1, %v49
    %v51 = vrot.slane %v42, %v50
    %v52 = vcombine.low %v47, %v51
    %v54 = vunpack.c.l.s4 1983009808
    %v55 = vunpack.c.0.s8 %v54
    %v56 = vlaneseq
    %v57 = vshrl.u32 %v56, 7
    %v58 = vsub.s32 %v55, %v57
    %v59 = vrot.slane %v52, %v58
    %v61 = vadd.f32 %v41, %v59
    %62 = vst [vmem:[#allocation5] sm:$0xf] %v61
    // Predicated region
    $region18: #{tpu_custom_call.1} parent=1 // pred_check
      _
    $region19: #{tpu_custom_call.1} parent=1 // pred_check_branch
      %64 = sbr.rel (0) target = $region21
    $region20: #{tpu_custom_call.1} parent=1 // pred_region
      %s66 = ssub.s32 64, 64
      %67 = vsyncadd [#allocation4], %s66
      %s69 = sshll.u32 [#allocation5], 4
      %s70 = int_to_ptr.vmem [resolvable:$true] %s69
      %72 = dma.vmem_to_hbm [thread:$0]  %s70, 64, %s3, [#allocation4]
    $region21: #{tpu_custom_call.1} parent=1 // pred_fallthru
      _
    // Predicated region
    $region22: #{tpu_custom_call.1} parent=1 // pred_check
      _
    $region23: #{tpu_custom_call.1} parent=1 // pred_check_branch
      %74 = sbr.rel (0) target = $region25
    $region24: #{tpu_custom_call.1} parent=1 // pred_region
      %75 = dma.done [#allocation4], 64
    $region25: #{tpu_custom_call.1} parent=1 // pred_fallthru
      _
    %76 = vsyncpa [#allocation3], 1
    %77 = vsyncpa [#allocation4], 1

</llo_original>
